<compile_context>
chip_gen: v5e
topology: v5e:2x2
jax: 0.10.0
libtpu: 0.0.40
codegen_flags: <defaults>
</compile_context>

<pallas_src>
import jax
import jax.numpy as jnp
from jax.experimental import pallas as pl
from jax.experimental.pallas import tpu as pltpu

VOCAB = 128
HIDDEN = 32
IGNORE_INDEX = -100


def _round_up(x, m):
    return (x + m - 1) // m * m


def _choose_tiling(n, target_tile_m=1024):
    """Lane-aligned token tiling.

    tile_m is a multiple of 128 (lane-dense blocks), ~target_tile_m tokens per
    block, with bounded tail padding; prefer >= 2 (even) blocks when the
    problem is big enough so the parallel grid axis can split across the two
    v7x TensorCores (harmless single extra grid step on v5e/v6e).
    """
    n128 = _round_up(max(n, 1), 128)
    nblk = pl.cdiv(n128, target_tile_m)
    if n128 >= 256:
        nblk = max(nblk, 2)
        nblk += nblk % 2
    tile_m = _round_up(pl.cdiv(n128, nblk), 128)
    num_blocks = pl.cdiv(n128, tile_m)
    return tile_m, num_blocks, num_blocks * tile_m


def clm_loss_kernel(xT_ref, wT_ref, b_ref, lbl_ref, out_ref):
    """Fused LM-head matmul + log-softmax CE + masked per-block reduction.

    Token-on-lanes layout (all operands lane-dense, no in-kernel relayout):
      xT_ref:  (H, TM)     bf16  hidden-state tile, tokens on lanes (streamed)
      wT_ref:  (V, H)      bf16  LM-head weight, transposed (resident)
      b_ref:   (V, 1)      f32   LM-head bias (resident)
      lbl_ref: (1, 1, TM)  i32   shifted labels, -100 => ignored (streamed)
      out_ref: (1, 1, 2)   f32   [partial loss sum, partial valid count]
    """
    # Transposed logits on the MXU: bf16 inputs, f32 accumulation.  (V, TM)
    logits = jnp.dot(wT_ref[...], xT_ref[...],
                     preferred_element_type=jnp.float32)
    logits = logits + b_ref[...]

    labels = lbl_ref[...][0]                                      # (1, TM) i32

    # Fused label gather: no f32 one-hot / extra (V, TM) multiply.
    row = jax.lax.broadcasted_iota(jnp.int32, logits.shape, 0)    # vocab id per sublane
    label_logit = jnp.sum(jnp.where(row == labels, logits, 0.0),
                          axis=0, keepdims=True)                  # (1, TM)

    # Numerically stable log-sum-exp over the vocab (sublane) axis, all f32
    # (v5e has no bf16 VPU/EUP; keep elementwise/EUP math in f32).
    m = jnp.max(logits, axis=0, keepdims=True)                    # (1, TM)
    lse = m + jnp.log(jnp.sum(jnp.exp(logits - m), axis=0, keepdims=True))

    valid = (labels != IGNORE_INDEX).astype(jnp.float32)          # (1, TM)
    per_tok = (lse - label_logit) * valid                         # (1, TM)

    # One packed per-block partial => single writeback DMA per grid step.
    out_ref[:, :, 0:1] = jnp.sum(per_tok, axis=1, keepdims=True).reshape(1, 1, 1)
    out_ref[:, :, 1:2] = jnp.sum(valid, axis=1, keepdims=True).reshape(1, 1, 1)


def clm_loss_pallas(hidden, labels, w_lm, b_lm, *, target_tile_m=1024):
    """hidden: (N, H) float; labels: (N,) int32 with -100 = ignore."""
    N, H = hidden.shape
    V = w_lm.shape[1]

    tile_m, num_blocks, n_padded = _choose_tiling(N, target_tile_m)
    pad = n_padded - N
    if pad:
        hidden = jnp.pad(hidden, ((0, pad), (0, 0)))
        labels = jnp.pad(labels, ((0, pad),), constant_values=IGNORE_INDEX)

    # Token-on-lanes layouts: every streamed operand is lane-dense in HBM.
    xT = jnp.transpose(hidden.astype(jnp.bfloat16))               # (H, n_padded) bf16
    wT = jnp.transpose(w_lm).astype(jnp.bfloat16)                 # (V, H) bf16
    b2d = b_lm.reshape(V, 1).astype(jnp.float32)                  # (V, 1) f32
    lbl = labels.astype(jnp.int32).reshape(num_blocks, 1, tile_m)

    cost = pl.CostEstimate(
        flops=2 * n_padded * H * V,
        transcendentals=n_padded * (V + 1),        # exp per logit + log per token
        bytes_accessed=(2 * H * n_padded           # hidden (bf16, lane-dense)
                        + 4 * n_padded             # labels (i32, lane-dense)
                        + 2 * V * 128              # LM-head weight (bf16, lanes pad 32->128)
                        + 4 * V * 128              # LM-head bias (f32, lanes pad 1->128)
                        + num_blocks * 2 * 4),     # packed partial outputs
    )

    out = pl.pallas_call(
        clm_loss_kernel,
        out_shape=jax.ShapeDtypeStruct((num_blocks, 1, 2), jnp.float32),
        grid_spec=pltpu.PrefetchScalarGridSpec(
            num_scalar_prefetch=0,
            grid=(num_blocks,),
            in_specs=[
                pl.BlockSpec((H, tile_m), lambda i: (0, i)),        # hidden tile
                pl.BlockSpec((V, H), lambda i: (0, 0)),             # LM-head weight (resident)
                pl.BlockSpec((V, 1), lambda i: (0, 0)),             # LM-head bias (resident)
                pl.BlockSpec((1, 1, tile_m), lambda i: (i, 0, 0)),  # labels tile
            ],
            out_specs=pl.BlockSpec((1, 1, 2), lambda i: (i, 0, 0)),
        ),
        compiler_params=pltpu.CompilerParams(
            dimension_semantics=("parallel",),
            vmem_limit_bytes=32 * 1024 * 1024,
        ),
        cost_estimate=cost,
    )(xT, wT, b2d, lbl)

    total_sum = jnp.sum(out[:, 0, 0])
    total_cnt = jnp.sum(out[:, 0, 1])
    # Guard: an all-masked batch would otherwise produce NaN.
    return jnp.where(total_cnt > 0, total_sum / total_cnt, jnp.float32(0.0))


# TODO(synk): for realistic vocab sizes (32k-128k) add a vocab grid axis with
# an online (running-max / running-sum-exp) log-softmax and size the (TM, TV)
# logits tile per generation (v7x has 64 MiB VMEM vs 128 MiB on v5e/v6e);
# the single-pass V=128 LSE here does not scale past one lane-block of vocab.


def clm_loss_forward(params, inputs):
    """Synthetic `auto_model(**inputs).loss` forward: glue in plain JAX,
    hot path in the fused Pallas kernel."""
    input_ids = inputs["input_ids"]            # (B, S) int32
    attention_mask = inputs["attention_mask"]  # (B, S) int32

    B, S = input_ids.shape
    # Tiny "model body": token embedding + position embedding (glue).
    hidden = params["tok_emb"][input_ids] + params["pos_emb"][None, :S, :]

    # HF convention: labels = input_ids with padded positions set to -100.
    labels = jnp.where(attention_mask == 1, input_ids, IGNORE_INDEX)

    # Causal shift: predict token t+1 from position t.
    hidden_shift = hidden[:, :-1, :].reshape(B * (S - 1), HIDDEN)
    labels_shift = labels[:, 1:].reshape(B * (S - 1)).astype(jnp.int32)

    return clm_loss_pallas(hidden_shift, labels_shift,
                           params["w_lm"], params["b_lm"])


def reference_loss(params, inputs):
    """Pure-JAX reference of the same forward.  The matmul operands are
    rounded to bf16 (matching the kernel's MXU inputs); everything else f32."""
    input_ids = inputs["input_ids"]
    attention_mask = inputs["attention_mask"]
    B, S = input_ids.shape
    hidden = params["tok_emb"][input_ids] + params["pos_emb"][None, :S, :]
    labels = jnp.where(attention_mask == 1, input_ids, IGNORE_INDEX)

    h_bf = hidden.astype(jnp.bfloat16).astype(jnp.float32)
    w_bf = params["w_lm"].astype(jnp.bfloat16).astype(jnp.float32)
    logits = h_bf @ w_bf + params["b_lm"]                      # (B, S, V) f32

    sl = logits[:, :-1, :].reshape(-1, VOCAB)
    ll = labels[:, 1:].reshape(-1)
    lse = jax.nn.logsumexp(sl, axis=-1)
    safe = jnp.clip(ll, 0, VOCAB - 1)
    picked = jnp.take_along_axis(sl, safe[:, None], axis=-1)[:, 0]
    valid = (ll != IGNORE_INDEX).astype(jnp.float32)
    return jnp.sum((lse - picked) * valid) / jnp.sum(valid)


if __name__ == "__main__":
    key = jax.random.PRNGKey(0)

    def run_case(batch, seq, case_key):
        k_tok, k_pos, k_w, k_b, k_ids, k_len = jax.random.split(case_key, 6)
        params = {
            "tok_emb": 0.02 * jax.random.normal(k_tok, (VOCAB, HIDDEN), jnp.float32),
            "pos_emb": 0.02 * jax.random.normal(k_pos, (seq, HIDDEN), jnp.float32),
            "w_lm": 0.02 * jax.random.normal(k_w, (HIDDEN, VOCAB), jnp.float32),
            "b_lm": 0.01 * jax.random.normal(k_b, (VOCAB,), jnp.float32),
        }
        input_ids = jax.random.randint(k_ids, (batch, seq), 0, VOCAB, jnp.int32)
        # Right-padding per sequence (each sequence keeps >= 2 real tokens).
        lengths = jax.random.randint(k_len, (batch,), 2, seq + 1, jnp.int32)
        attention_mask = (jnp.arange(seq)[None, :] < lengths[:, None]).astype(jnp.int32)
        inputs = {"input_ids": input_ids, "attention_mask": attention_mask}

        loss = clm_loss_forward(params, inputs)
        jax.block_until_ready(loss)
        ref = reference_loss(params, inputs)
        assert jnp.allclose(loss, ref, rtol=1e-4, atol=1e-4), (batch, seq, loss, ref)

    k1, k2 = jax.random.split(key)
    run_case(2, 8, k1)    # tiny: single 128-token block
    run_case(3, 96, k2)   # multi-block path: 2 blocks + tail padding + masking

    print("KERNEL_OK")
</pallas_src>

<mosaic_0001>
module attributes {stable_mosaic.version = 11 : i64} {
  func.func @clm_loss_kernel(%arg0: i32, %arg1: memref<32x128xbf16, #tpu.memory_space<vmem>>, %arg2: memref<128x32xbf16, #tpu.memory_space<vmem>>, %arg3: memref<128x1xf32, #tpu.memory_space<vmem>>, %arg4: memref<1x1x128xi32, #tpu.memory_space<vmem>>, %arg5: memref<1x1x2xf32, #tpu.memory_space<vmem>>) attributes {dimension_semantics = [#tpu.dimension_semantics<parallel>], iteration_bounds = array<i64: 1>, scalar_prefetch = 0 : i64, scratch_operands = 0 : i64, tpu.core_type = #tpu.core_type<tc>, window_params = [{transform_indices = @transform_0, window_bounds = array<i64: 32, 128>}, {pipeline_mode = #tpu.pipeline_mode<synchronous>, transform_indices = @transform_1, window_bounds = array<i64: 128, 32>}, {pipeline_mode = #tpu.pipeline_mode<synchronous>, transform_indices = @transform_2, window_bounds = array<i64: 128, 1>}, {transform_indices = @transform_3, window_bounds = array<i64: 1, 1, 128>}, {transform_indices = @transform_4, window_bounds = array<i64: 1, 1, 2>}]} {
    %c0 = arith.constant 0 : index
    %c0_0 = arith.constant 0 : index
    %0 = vector.load %arg2[%c0, %c0_0] : memref<128x32xbf16, #tpu.memory_space<vmem>>, vector<128x32xbf16>
    %c0_1 = arith.constant 0 : index
    %c0_2 = arith.constant 0 : index
    %1 = vector.load %arg1[%c0_1, %c0_2] : memref<32x128xbf16, #tpu.memory_space<vmem>>, vector<32x128xbf16>
    %cst = arith.constant dense<0.000000e+00> : vector<128x128xf32>
    %2 = tpu.matmul %0, %1, %cst {dimension_numbers = #tpu.dot_dimension_numbers<[1], [0], [0], [1], [0, 0, 1, 1], [], []>} : vector<128x32xbf16>, vector<32x128xbf16>, vector<128x128xf32> -> vector<128x128xf32>
    %c0_3 = arith.constant 0 : index
    %c0_4 = arith.constant 0 : index
    %3 = vector.load %arg3[%c0_3, %c0_4] : memref<128x1xf32, #tpu.memory_space<vmem>>, vector<128x1xf32>
    %4 = vector.broadcast %3 : vector<128x1xf32> to vector<128x128xf32>
    %5 = arith.addf %2, %4 : vector<128x128xf32>
    %c0_5 = arith.constant 0 : index
    %c0_6 = arith.constant 0 : index
    %c0_7 = arith.constant 0 : index
    %6 = vector.load %arg4[%c0_5, %c0_6, %c0_7] : memref<1x1x128xi32, #tpu.memory_space<vmem>>, vector<1x1x128xi32>
    %7 = vector.shape_cast %6 : vector<1x1x128xi32> to vector<1x128xi32>
    %8 = tpu.iota {dimensions = array<i32: 0>} : vector<128x128xi32>
    %9 = vector.broadcast %7 : vector<1x128xi32> to vector<128x128xi32>
    %10 = arith.cmpi eq, %8, %9 : vector<128x128xi32>
    %cst_8 = arith.constant 0.000000e+00 : f32
    %11 = vector.broadcast %cst_8 : f32 to vector<128x128xf32>
    %12 = arith.select %10, %5, %11 : vector<128x128xi1>, vector<128x128xf32>
    %cst_9 = arith.constant dense<0.000000e+00> : vector<128xf32>
    %13 = vector.multi_reduction <add>, %12, %cst_9 [0] : vector<128x128xf32> to vector<128xf32>
    %14 = vector.shape_cast %13 : vector<128xf32> to vector<1x128xf32>
    %cst_10 = arith.constant dense<0xFF800000> : vector<128xf32>
    %15 = vector.multi_reduction <maximumf>, %5, %cst_10 [0] : vector<128x128xf32> to vector<128xf32>
    %16 = vector.shape_cast %15 : vector<128xf32> to vector<1x128xf32>
    %17 = vector.broadcast %16 : vector<1x128xf32> to vector<128x128xf32>
    %18 = arith.subf %5, %17 : vector<128x128xf32>
    %19 = math.exp %18 : vector<128x128xf32>
    %cst_11 = arith.constant dense<0.000000e+00> : vector<128xf32>
    %20 = vector.multi_reduction <add>, %19, %cst_11 [0] : vector<128x128xf32> to vector<128xf32>
    %21 = vector.shape_cast %20 : vector<128xf32> to vector<1x128xf32>
    %22 = math.log %21 : vector<1x128xf32>
    %23 = arith.addf %16, %22 : vector<1x128xf32>
    %c-100_i32 = arith.constant -100 : i32
    %24 = vector.broadcast %c-100_i32 : i32 to vector<1x128xi32>
    %25 = arith.cmpi ne, %7, %24 : vector<1x128xi32>
    %26 = arith.extui %25 : vector<1x128xi1> to vector<1x128xi32>
    %27 = arith.sitofp %26 : vector<1x128xi32> to vector<1x128xf32>
    %28 = arith.subf %23, %14 : vector<1x128xf32>
    %29 = arith.mulf %28, %27 : vector<1x128xf32>
    %cst_12 = arith.constant dense<0.000000e+00> : vector<1xf32>
    %30 = vector.multi_reduction <add>, %29, %cst_12 [1] : vector<1x128xf32> to vector<1xf32>
    %31 = vector.shape_cast %30 : vector<1xf32> to vector<1x1xf32>
    %32 = vector.shape_cast %31 : vector<1x1xf32> to vector<1x1x1xf32>
    %c0_13 = arith.constant 0 : index
    %c0_14 = arith.constant 0 : index
    %c0_15 = arith.constant 0 : index
    %33 = vector.load %arg5[%c0_13, %c0_14, %c0_15] : memref<1x1x2xf32, #tpu.memory_space<vmem>>, vector<1x1x1xf32>
    tpu.vector_store %arg5[%c0_13, %c0_14, %c0_15], %32 {strides = array<i32>} : memref<1x1x2xf32, #tpu.memory_space<vmem>>, vector<1x1x1xf32>,
    %cst_16 = arith.constant dense<0.000000e+00> : vector<1xf32>
    %34 = vector.multi_reduction <add>, %27, %cst_16 [1] : vector<1x128xf32> to vector<1xf32>
    %35 = vector.shape_cast %34 : vector<1xf32> to vector<1x1xf32>
    %36 = vector.shape_cast %35 : vector<1x1xf32> to vector<1x1x1xf32>
    %c0_17 = arith.constant 0 : index
    %c0_18 = arith.constant 0 : index
    %c1 = arith.constant 1 : index
    %37 = vector.load %arg5[%c0_17, %c0_18, %c1] : memref<1x1x2xf32, #tpu.memory_space<vmem>>, vector<1x1x1xf32>
    tpu.vector_store %arg5[%c0_17, %c0_18, %c1], %36 {strides = array<i32>} : memref<1x1x2xf32, #tpu.memory_space<vmem>>, vector<1x1x1xf32>,
    return
  }
  func.func @transform_0(%arg0: i32) -> (i32, i32) {
    %c0_i32 = arith.constant 0 : i32
    %c0_i32_0 = arith.constant 0 : i32
    return %c0_i32, %arg0 : i32, i32
  }
  func.func @transform_1(%arg0: i32) -> (i32, i32) {
    %c0_i32 = arith.constant 0 : i32
    %c0_i32_0 = arith.constant 0 : i32
    %c0_i32_1 = arith.constant 0 : i32
    return %c0_i32, %c0_i32_0 : i32, i32
  }
  func.func @transform_2(%arg0: i32) -> (i32, i32) {
    %c0_i32 = arith.constant 0 : i32
    %c0_i32_0 = arith.constant 0 : i32
    %c0_i32_1 = arith.constant 0 : i32
    return %c0_i32, %c0_i32_0 : i32, i32
  }
  func.func @transform_3(%arg0: i32) -> (i32, i32, i32) {
    %c0_i32 = arith.constant 0 : i32
    %c0_i32_0 = arith.constant 0 : i32
    %c0_i32_1 = arith.constant 0 : i32
    return %arg0, %c0_i32, %c0_i32_0 : i32, i32, i32
  }
  func.func @transform_4(%arg0: i32) -> (i32, i32, i32) {
    %c0_i32 = arith.constant 0 : i32
    %c0_i32_0 = arith.constant 0 : i32
    %c0_i32_1 = arith.constant 0 : i32
    return %arg0, %c0_i32, %c0_i32_0 : i32, i32, i32
  }
}

</mosaic_0001>

<llo_original>
// kernel: tpu_custom_call.1
$region0: #{tpu_custom_call.1}
  #allocation0 [shape = 'u32[]', space=smem, size = 0x4, offset = 0x4, fixed_abs, tag = 'smem constant byte address 0x4 - core index']
  #allocation1 [shape = 'u32[72,128]{1,0:T(1,128)}', space=vmem, size = 0x9000, scoped, tag = 'internal scratch']
  %s0 = inlined_call_operand.vmem [shape: bf16[32,128], index: 0, kind: input, shape index: {}]
  %s1 = inlined_call_operand.vmem [shape: bf16[128,32], index: 1, kind: input, shape index: {}]
  %s2 = inlined_call_operand.vmem [shape: f32[128,1], index: 2, kind: input, shape index: {}]
  %s3 = inlined_call_operand.vmem [shape: s32[1,1,128], index: 3, kind: input, shape index: {}]
  %s4 = inlined_call_operand.hbm [shape: f32[1,1,2], index: 4, kind: output, shape index: {}]
  %s5 = sld [smem:[#allocation0]]
  $region26: #{tpu_custom_call.1} parent=0
    _
  %s7 = ssub.s32 1, %s5
  %s8 = scalar_select 0, %s7, %s5
  $region1: #{tpu_custom_call.1} parent=0
    #allocation2 [shape = 'u8[512]{0}', space=vmem, size = 0x400, scoped, tag = 'output window, operand 0, single buffered']
    #allocation3 [shape = 's32[1]{0}', space=sflag, size = 0x4, scoped, tag = 'scoped memory for tpu_custom_call.1']
    %9 = vsyncpa [#allocation3], 0
    // Predicated region
    $region2: #{tpu_custom_call.1} parent=1 // pred_check
      _
    $region3: #{tpu_custom_call.1} parent=1 // pred_check_branch
      %11 = sbr.rel (0) target = $region5
    $region4: #{tpu_custom_call.1} parent=1 // pred_region
      _
    $region5: #{tpu_custom_call.1} parent=1 // pred_fallthru
      _
    // Predicated region
    $region6: #{tpu_custom_call.1} parent=1 // pred_check
      _
    $region7: #{tpu_custom_call.1} parent=1 // pred_check_branch
      %13 = sbr.rel (0) target = $region9
    $region8: #{tpu_custom_call.1} parent=1 // pred_region
      _
    $region9: #{tpu_custom_call.1} parent=1 // pred_fallthru
      _
    // Predicated region
    $region10: #{tpu_custom_call.1} parent=1 // pred_check
      _
    $region11: #{tpu_custom_call.1} parent=1 // pred_check_branch
      %15 = sbr.rel (0) target = $region13
    $region12: #{tpu_custom_call.1} parent=1 // pred_region
      _
    $region13: #{tpu_custom_call.1} parent=1 // pred_fallthru
      _
    // Predicated region
    $region14: #{tpu_custom_call.1} parent=1 // pred_check
      _
    $region15: #{tpu_custom_call.1} parent=1 // pred_check_branch
      %17 = sbr.rel (0) target = $region17
    $region16: #{tpu_custom_call.1} parent=1 // pred_region
      _
    $region17: #{tpu_custom_call.1} parent=1 // pred_fallthru
      _
    %v19 = vld [vmem:[%s1] sm:$0xf]
    %v20 = vld [vmem:[%s1 + $0x4] sm:$0xf]
    %v21 = vld [vmem:[%s1 + $0x8] sm:$0xf]
    %v22 = vld [vmem:[%s1 + $0xc] sm:$0xf]
    %v23 = vld [vmem:[%s1 + $0x10] sm:$0xf]
    %v24 = vld [vmem:[%s1 + $0x14] sm:$0xf]
    %v25 = vld [vmem:[%s1 + $0x18] sm:$0xf]
    %v26 = vld [vmem:[%s1 + $0x1c] sm:$0xf]
    %v27 = vld [vmem:[%s1 + $0x20] sm:$0xf]
    %v28 = vld [vmem:[%s1 + $0x24] sm:$0xf]
    %v29 = vld [vmem:[%s1 + $0x28] sm:$0xf]
    %v30 = vld [vmem:[%s1 + $0x2c] sm:$0xf]
    %v31 = vld [vmem:[%s1 + $0x30] sm:$0xf]
    %v32 = vld [vmem:[%s1 + $0x34] sm:$0xf]
    %v33 = vld [vmem:[%s1 + $0x38] sm:$0xf]
    %v34 = vld [vmem:[%s1 + $0x3c] sm:$0xf]
    %v35 = vld [vmem:[%s0] sm:$0xf]
    %v36 = vld [vmem:[%s0 + $0x4] sm:$0xf]
    %v37 = vld [vmem:[%s0 + $0x8] sm:$0xf]
    %v38 = vld [vmem:[%s0 + $0xc] sm:$0xf]
    %v39 = vld [vmem:[%s2] sm:$0xff]
    %v40 = vld [vmem:[%s2 + $0x8] sm:$0xff]
    %v41 = vld [vmem:[%s2 + $0x10] sm:$0xff]
    %v42 = vld [vmem:[%s2 + $0x18] sm:$0xff]
    %v43 = vld [vmem:[%s2 + $0x20] sm:$0xff]
    %v44 = vld [vmem:[%s2 + $0x28] sm:$0xff]
    %v45 = vld [vmem:[%s2 + $0x30] sm:$0xff]
    %v46 = vld [vmem:[%s2 + $0x38] sm:$0xff]
    %v47 = vld [vmem:[%s2 + $0x40] sm:$0xff]
    %v48 = vld [vmem:[%s2 + $0x48] sm:$0xff]
    %v49 = vld [vmem:[%s2 + $0x50] sm:$0xff]
    %v50 = vld [vmem:[%s2 + $0x58] sm:$0xff]
    %v51 = vld [vmem:[%s2 + $0x60] sm:$0xff]
    %v52 = vld [vmem:[%s2 + $0x68] sm:$0xff]
    %v53 = vld [vmem:[%s2 + $0x70] sm:$0xff]
    %v54 = vld [vmem:[%s2 + $0x78] sm:$0xff]
    %56 = vset.pattern.permute.xlu0 0
    %57 = vperm.xlu0 %56, %v39
    %v58 = vpop.permute.xlu0 %57
    %61 = vset.pattern.permute.xlu0 0
    %62 = vperm.xlu0 %61, %v40
    %v63 = vpop.permute.xlu0 %62
    %66 = vset.pattern.permute.xlu0 0
    %67 = vperm.xlu0 %66, %v41
    %v68 = vpop.permute.xlu0 %67
    %71 = vset.pattern.permute.xlu0 0
    %72 = vperm.xlu0 %71, %v42
    %v73 = vpop.permute.xlu0 %72
    %76 = vset.pattern.permute.xlu0 0
    %77 = vperm.xlu0 %76, %v43
    %v78 = vpop.permute.xlu0 %77
    %81 = vset.pattern.permute.xlu0 0
    %82 = vperm.xlu0 %81, %v44
    %v83 = vpop.permute.xlu0 %82
    %86 = vset.pattern.permute.xlu0 0
    %87 = vperm.xlu0 %86, %v45
    %v88 = vpop.permute.xlu0 %87
    %91 = vset.pattern.permute.xlu0 0
    %92 = vperm.xlu0 %91, %v46
    %v93 = vpop.permute.xlu0 %92
    %96 = vset.pattern.permute.xlu0 0
    %97 = vperm.xlu0 %96, %v47
    %v98 = vpop.permute.xlu0 %97
    %101 = vset.pattern.permute.xlu0 0
    %102 = vperm.xlu0 %101, %v48
    %v103 = vpop.permute.xlu0 %102
    %106 = vset.pattern.permute.xlu0 0
    %107 = vperm.xlu0 %106, %v49
    %v108 = vpop.permute.xlu0 %107
    %111 = vset.pattern.permute.xlu0 0
    %112 = vperm.xlu0 %111, %v50
    %v113 = vpop.permute.xlu0 %112
    %116 = vset.pattern.permute.xlu0 0
    %117 = vperm.xlu0 %116, %v51
    %v118 = vpop.permute.xlu0 %117
    %121 = vset.pattern.permute.xlu0 0
    %122 = vperm.xlu0 %121, %v52
    %v123 = vpop.permute.xlu0 %122
    %126 = vset.pattern.permute.xlu0 0
    %127 = vperm.xlu0 %126, %v53
    %v128 = vpop.permute.xlu0 %127
    %131 = vset.pattern.permute.xlu0 0
    %132 = vperm.xlu0 %131, %v54
    %v133 = vpop.permute.xlu0 %132
    %v151 = vunpack.c.l.b16 %v19
    %v152 = vunpack.c.l.b16 %v20
    %v153 = vunpack.c.l.b16 %v21
    %v154 = vunpack.c.l.b16 %v22
    %v155 = vunpack.c.l.b16 %v23
    %v156 = vunpack.c.l.b16 %v24
    %v157 = vunpack.c.l.b16 %v25
    %v158 = vunpack.c.l.b16 %v26
    %v159 = vunpack.c.l.b16 %v27
    %v160 = vunpack.c.l.b16 %v28
    %v161 = vunpack.c.l.b16 %v29
    %v162 = vunpack.c.l.b16 %v30
    %v163 = vunpack.c.l.b16 %v31
    %v164 = vunpack.c.l.b16 %v32
    %v165 = vunpack.c.l.b16 %v33
    %v166 = vunpack.c.l.b16 %v34
    %v167 = vpack.c.b16 %v152, %v151
    %v168 = vpack.c.b16 %v154, %v153
    %v169 = vpack.c.b16 %v156, %v155
    %v170 = vpack.c.b16 %v158, %v157
    %v171 = vpack.c.b16 %v160, %v159
    %v172 = vpack.c.b16 %v162, %v161
    %v173 = vpack.c.b16 %v164, %v163
    %v174 = vpack.c.b16 %v166, %v165
    %v179 = vunpack.c.l.b16 %v35
    %v180 = vunpack.c.l.b16 %v36
    %v181 = vunpack.c.l.b16 %v37
    %v182 = vunpack.c.l.b16 %v38
    %v183 = vpack.c.b16 %v180, %v179
    %v184 = vpack.c.b16 %v182, %v181
    %vm187 = vcmask 261120
    %v189 = vsel %vm187, %v167, 0
    %v192 = vsel %vm187, %v168, 0
    %v195 = vsel %vm187, %v169, 0
    %v198 = vsel %vm187, %v170, 0
    %v201 = vsel %vm187, %v171, 0
    %v204 = vsel %vm187, %v172, 0
    %v207 = vsel %vm187, %v173, 0
    %v210 = vsel %vm187, %v174, 0
    %212 = vmatpush.bf16.msra.mxu0 0
    %213 = vmatpush.bf16.msra.mxu0 0
    %214 = vmatpush.bf16.msra.mxu0 0
    %215 = vmatpush.bf16.msra.mxu0 0
    %216 = vmatpush.bf16.msra.mxu0 0
    %217 = vmatpush.bf16.msra.mxu0 0
    %218 = vmatpush.bf16.msra.mxu0 %v184
    %219 = vmatpush.bf16.msra.mxu0 %v183
    %220 = vmatmul.bf16.gmra.mxu0 %v189
    %v221 = vpop.f32.mrf.mxu0
    %v222 = vadd.f32 %v58, %v221
    %v223 = vpop.f32.mrf.mxu0
    %v224 = vadd.f32 %v63, %v223
    %225 = vmatmul.bf16.gmra.mxu0 %v192
    %v226 = vpop.f32.mrf.mxu0
    %v227 = vadd.f32 %v68, %v226
    %v228 = vpop.f32.mrf.mxu0
    %v229 = vadd.f32 %v73, %v228
    %230 = vmatmul.bf16.gmra.mxu0 %v195
    %v231 = vpop.f32.mrf.mxu0
    %v232 = vadd.f32 %v78, %v231
    %v233 = vpop.f32.mrf.mxu0
    %v234 = vadd.f32 %v83, %v233
    %235 = vmatmul.bf16.gmra.mxu0 %v198
    %v236 = vpop.f32.mrf.mxu0
    %v237 = vadd.f32 %v88, %v236
    %v238 = vpop.f32.mrf.mxu0
    %v239 = vadd.f32 %v93, %v238
    %240 = vmatmul.bf16.gmra.mxu0 %v201
    %v241 = vpop.f32.mrf.mxu0
    %v242 = vadd.f32 %v98, %v241
    %v243 = vpop.f32.mrf.mxu0
    %v244 = vadd.f32 %v103, %v243
    %245 = vmatmul.bf16.gmra.mxu0 %v204
    %v246 = vpop.f32.mrf.mxu0
    %v247 = vadd.f32 %v108, %v246
    %v248 = vpop.f32.mrf.mxu0
    %v249 = vadd.f32 %v113, %v248
    %250 = vmatmul.bf16.gmra.mxu0 %v207
    %v251 = vpop.f32.mrf.mxu0
    %v252 = vadd.f32 %v118, %v251
    %v253 = vpop.f32.mrf.mxu0
    %v254 = vadd.f32 %v123, %v253
    %255 = vmatmul.bf16.gmra.mxu0 %v210
    %v256 = vpop.f32.mrf.mxu0
    %v257 = vadd.f32 %v128, %v256
    %v258 = vpop.f32.mrf.mxu0
    %v259 = vadd.f32 %v133, %v258
    %260 = vdwg.mxu0
    %v261 = vld [vmem:[%s3] sm:$0x1]
    %v262 = vlaneseq
    %v263 = vshrl.u32 %v262, 7
    %v264 = vadd.s32 %v263, 8
    %v265 = vadd.s32 %v263, 16
    %v266 = vadd.s32 %v263, 24
    %v267 = vadd.s32 %v263, 32
    %v268 = vadd.s32 %v263, 40
    %v269 = vadd.s32 %v263, 48
    %v270 = vadd.s32 %v263, 56
    %v271 = vadd.s32 %v263, 64
    %v272 = vadd.s32 %v263, 72
    %v273 = vadd.s32 %v263, 80
    %v274 = vadd.s32 %v263, 88
    %v275 = vadd.s32 %v263, 96
    %v276 = vadd.s32 %v263, 104
    %v277 = vadd.s32 %v263, 112
    %v278 = vadd.s32 %v263, 120
    %v279 = vperm.slane %v261, 0
    %vm280 = vcmp.eq.s32.totalorder %v263, %v279
    %vm281 = vcmp.eq.s32.totalorder %v264, %v279
    %vm282 = vcmp.eq.s32.totalorder %v265, %v279
    %vm283 = vcmp.eq.s32.totalorder %v266, %v279
    %vm284 = vcmp.eq.s32.totalorder %v267, %v279
    %vm285 = vcmp.eq.s32.totalorder %v268, %v279
    %vm286 = vcmp.eq.s32.totalorder %v269, %v279
    %vm287 = vcmp.eq.s32.totalorder %v270, %v279
    %vm288 = vcmp.eq.s32.totalorder %v271, %v279
    %vm289 = vcmp.eq.s32.totalorder %v272, %v279
    %vm290 = vcmp.eq.s32.totalorder %v273, %v279
    %vm291 = vcmp.eq.s32.totalorder %v274, %v279
    %vm292 = vcmp.eq.s32.totalorder %v275, %v279
    %vm293 = vcmp.eq.s32.totalorder %v276, %v279
    %vm294 = vcmp.eq.s32.totalorder %v277, %v279
    %vm295 = vcmp.eq.s32.totalorder %v278, %v279
    %v296 = vsel %vm280, %v222, 0.0
    %v297 = vsel %vm281, %v224, 0.0
    %v298 = vsel %vm282, %v227, 0.0
    %v299 = vsel %vm283, %v229, 0.0
    %v300 = vsel %vm284, %v232, 0.0
    %v301 = vsel %vm285, %v234, 0.0
    %v302 = vsel %vm286, %v237, 0.0
    %v303 = vsel %vm287, %v239, 0.0
    %v304 = vsel %vm288, %v242, 0.0
    %v305 = vsel %vm289, %v244, 0.0
    %v306 = vsel %vm290, %v247, 0.0
    %v307 = vsel %vm291, %v249, 0.0
    %v308 = vsel %vm292, %v252, 0.0
    %v309 = vsel %vm293, %v254, 0.0
    %v310 = vsel %vm294, %v257, 0.0
    %v311 = vsel %vm295, %v259, 0.0
    %v312 = vadd.f32 %v296, %v297
    %v313 = vadd.f32 %v312, %v298
    %v314 = vadd.f32 %v313, %v299
    %v315 = vadd.f32 %v314, %v300
    %v316 = vadd.f32 %v315, %v301
    %v317 = vadd.f32 %v316, %v302
    %v318 = vadd.f32 %v317, %v303
    %v319 = vadd.f32 %v318, %v304
    %v320 = vadd.f32 %v319, %v305
    %v321 = vadd.f32 %v320, %v306
    %v322 = vadd.f32 %v321, %v307
    %v323 = vadd.f32 %v322, %v308
    %v324 = vadd.f32 %v323, %v309
    %v325 = vadd.f32 %v324, %v310
    %v326 = vadd.f32 %v325, %v311
    %v327 = vrot.slane %v326, 4
    %v328 = vadd.f32 %v326, %v327
    %v329 = vrot.slane %v328, 2
    %v330 = vadd.f32 %v328, %v329
    %v331 = vrot.slane %v330, 1
    %v332 = vadd.f32 %v330, %v331
    %v333 = vmax.f32 %v222, %v232
    %v334 = vmax.f32 %v224, %v234
    %v335 = vmax.f32 %v227, %v237
    %v336 = vmax.f32 %v229, %v239
    %v337 = vmax.f32 %v333, %v242
    %v338 = vmax.f32 %v334, %v244
    %v339 = vmax.f32 %v335, %v247
    %v340 = vmax.f32 %v336, %v249
    %v341 = vmax.f32 %v337, %v252
    %v342 = vmax.f32 %v338, %v254
    %v343 = vmax.f32 %v339, %v257
    %v344 = vmax.f32 %v340, %v259
    %v345 = vmax.f32 %v341, %v342
    %v346 = vmax.f32 %v343, %v344
    %v347 = vmax.f32 %v345, %v346
    %v348 = vrot.slane %v347, 4
    %v349 = vmax.f32 %v347, %v348
    %v350 = vrot.slane %v349, 2
    %v351 = vmax.f32 %v349, %v350
    %v352 = vrot.slane %v351, 1
    %v353 = vmax.f32 %v351, %v352
    %v354 = vsub.f32 %v222, %v353
    %v355 = vsub.f32 %v224, %v353
    %v356 = vsub.f32 %v227, %v353
    %v357 = vsub.f32 %v229, %v353
    %v358 = vsub.f32 %v232, %v353
    %v359 = vsub.f32 %v234, %v353
    %v360 = vsub.f32 %v237, %v353
    %v361 = vsub.f32 %v239, %v353
    %v362 = vsub.f32 %v242, %v353
    %v363 = vsub.f32 %v244, %v353
    %v364 = vsub.f32 %v247, %v353
    %v365 = vsub.f32 %v249, %v353
    %v366 = vsub.f32 %v252, %v353
    %v367 = vsub.f32 %v254, %v353
    %v368 = vsub.f32 %v257, %v353
    %v369 = vsub.f32 %v259, %v353
    %v370 = vmul.f32 %v354, 1.442695
    %v371 = vpow.pop %v370
    %v372 = vmul.f32 %v355, 1.442695
    %v373 = vpow.pop %v372
    %v374 = vmul.f32 %v356, 1.442695
    %v375 = vpow.pop %v374
    %v376 = vmul.f32 %v357, 1.442695
    %v377 = vpow.pop %v376
    %v378 = vmul.f32 %v358, 1.442695
    %v379 = vpow.pop %v378
    %v380 = vmul.f32 %v359, 1.442695
    %v381 = vpow.pop %v380
    %v382 = vmul.f32 %v360, 1.442695
    %v383 = vpow.pop %v382
    %v384 = vmul.f32 %v361, 1.442695
    %v385 = vpow.pop %v384
    %v386 = vmul.f32 %v362, 1.442695
    %v387 = vpow.pop %v386
    %v388 = vmul.f32 %v363, 1.442695
    %v389 = vpow.pop %v388
    %v390 = vmul.f32 %v364, 1.442695
    %v391 = vpow.pop %v390
    %v392 = vmul.f32 %v365, 1.442695
    %v393 = vpow.pop %v392
    %v394 = vmul.f32 %v366, 1.442695
    %v395 = vpow.pop %v394
    %v396 = vmul.f32 %v367, 1.442695
    %v397 = vpow.pop %v396
    %v398 = vmul.f32 %v368, 1.442695
    %v399 = vpow.pop %v398
    %v400 = vmul.f32 %v369, 1.442695
    %v401 = vpow.pop %v400
    %v402 = vadd.f32 %v371, %v373
    %v403 = vadd.f32 %v402, %v375
    %v404 = vadd.f32 %v403, %v377
    %v405 = vadd.f32 %v404, %v379
    %v406 = vadd.f32 %v405, %v381
    %v407 = vadd.f32 %v406, %v383
    %v408 = vadd.f32 %v407, %v385
    %v409 = vadd.f32 %v408, %v387
    %v410 = vadd.f32 %v409, %v389
    %v411 = vadd.f32 %v410, %v391
    %v412 = vadd.f32 %v411, %v393
    %v413 = vadd.f32 %v412, %v395
    %v414 = vadd.f32 %v413, %v397
    %v415 = vadd.f32 %v414, %v399
    %v416 = vadd.f32 %v415, %v401
    %v417 = vrot.slane %v416, 4
    %v418 = vadd.f32 %v416, %v417
    %v419 = vrot.slane %v418, 2
    %v420 = vadd.f32 %v418, %v419
    %v421 = vrot.slane %v420, 1
    %v422 = vadd.f32 %v420, %v421
    %v423 = vlog2.pop %v422
    %v424 = vmul.f32 %v423, 0.6931472
    %v425 = vadd.f32 %v353, %v424
    %vm426 = vcmp.ne.s32.totalorder %v261, 4294967196
    %v427 = vsel %vm426, 1, 0
    %v428 = vcvt.s32.f32 %v427
    %v429 = vsub.f32 %v425, %v332
    %v430 = vmul.f32 %v429, %v428
    %vm431 = vcmask 1040384
    %v432 = vsel %vm431, %v430, 0.0
    %433 = vadd.xlane.f32.xlu0 %v432
    %v434 = vpop.xlane.xlu0 %433
    %vm435 = vcmask 0
    %436 = vst.msk [vmem:[#allocation2] sm:$0x1] %vm435, %v434
    %v437 = vsel %vm431, %v428, 0.0
    %438 = vadd.xlane.f32.xlu0 %v437
    %v439 = vpop.xlane.xlu0 %438
    %vm440 = vcmask 8200
    %441 = vst.msk [vmem:[#allocation2] sm:$0x1] %vm440, %v439
    // Predicated region
    $region18: #{tpu_custom_call.1} parent=1 // pred_check
      _
    $region19: #{tpu_custom_call.1} parent=1 // pred_check_branch
      %443 = sbr.rel (0) target = $region21
    $region20: #{tpu_custom_call.1} parent=1 // pred_region
      %445 = vsyncadd [#allocation3], 0
      %s447 = sshll.u32 [#allocation2], 4
      %s448 = int_to_ptr.vmem [resolvable:$true] %s447
      %s449 = sshll.u32 %s4, 4
      %s450 = int_to_ptr.hbm [resolvable:$true] %s449
      %452 = dma.vmem_to_hbm [thread:$0]  %s448, 16, %s450, [#allocation3]
    $region21: #{tpu_custom_call.1} parent=1 // pred_fallthru
      _
    // Predicated region
    $region22: #{tpu_custom_call.1} parent=1 // pred_check
      _
    $region23: #{tpu_custom_call.1} parent=1 // pred_check_branch
      %454 = sbr.rel (0) target = $region25
    $region24: #{tpu_custom_call.1} parent=1 // pred_region
      %456 = dma.done [#allocation3], 16
    $region25: #{tpu_custom_call.1} parent=1 // pred_fallthru
      _
    %457 = vsyncpa [#allocation3], 1

</llo_original>
